<compile_context>
chip_gen: v7x
topology: tpu7x:2x2x1
jax: 0.10.0
libtpu: 0.0.40
codegen_flags: <defaults>
</compile_context>

<pallas_src>
import jax
import jax.numpy as jnp
from jax.experimental import pallas as pl
from jax.experimental.pallas import tpu as pltpu

LANES = 128          # padded hidden lane width (hidden dims zero-padded to 128)
ROW_TILE = 2048      # row tile used when the batch is large


def adversary_kernel(z_ref, w_ref, b_ref, out_ref):
    """Fused 4-layer MLP.

    z_ref:   (T, in_dim)      bf16 (or f32) activations
    w_ref:   (128, 4*128)     packed, zero-padded weights (fan_in, fan_out per layer)
    b_ref:   (1,   4*128)     packed, zero-padded biases (f32)
    out_ref: (T, n_sensitive) f32
    """
    H = LANES
    in_dim = z_ref.shape[1]
    n_out = out_ref.shape[1]
    wdt = w_ref.dtype

    z = z_ref[...]                                           # (T, in_dim)

    # Layer 1: ReLU(Z @ W1 + b1)   (only the first in_dim K-rows of the slab are real)
    h = jnp.dot(z, w_ref[:in_dim, 0:H], preferred_element_type=jnp.float32)
    h = jnp.maximum(h + b_ref[:, 0:H], 0.0)
    # Layer 2: ReLU(h @ W2 + b2)   (padded lanes of h are exactly zero)
    h = jnp.dot(h.astype(wdt), w_ref[:, H:2 * H], preferred_element_type=jnp.float32)
    h = jnp.maximum(h + b_ref[:, H:2 * H], 0.0)
    # Layer 3: ReLU(h @ W3 + b3)
    h = jnp.dot(h.astype(wdt), w_ref[:, 2 * H:3 * H], preferred_element_type=jnp.float32)
    h = jnp.maximum(h + b_ref[:, 2 * H:3 * H], 0.0)
    # Layer 4: h @ W4 + b4 (no activation); keep only the real output columns.
    h = jnp.dot(h.astype(wdt), w_ref[:, 3 * H:4 * H], preferred_element_type=jnp.float32)
    h = h + b_ref[:, 3 * H:4 * H]
    out_ref[...] = h[:, :n_out].astype(out_ref.dtype)


def pack_adversary_params(params, in_dim, n_hidden, n_sensitive,
                          w_dtype=jnp.bfloat16):
    """Pack 4 (W, b) pairs into one zero-padded weight slab and one f32 bias slab.

    Weights are stored (fan_in, fan_out), i.e. x @ W == PyTorch x @ W_torch.T.
    Done once at parameter-prep time (not per forward call).
    """
    assert in_dim <= LANES and n_hidden <= LANES and n_sensitive <= LANES
    (w1, b1), (w2, b2), (w3, b3), (w4, b4) = params
    K, H = LANES, LANES
    w = jnp.zeros((K, 4 * H), w_dtype)
    b = jnp.zeros((1, 4 * H), jnp.float32)
    w = w.at[:in_dim,   0 * H:0 * H + n_hidden].set(w1.astype(w_dtype))
    w = w.at[:n_hidden, 1 * H:1 * H + n_hidden].set(w2.astype(w_dtype))
    w = w.at[:n_hidden, 2 * H:2 * H + n_hidden].set(w3.astype(w_dtype))
    w = w.at[:n_hidden, 3 * H:3 * H + n_sensitive].set(w4.astype(w_dtype))
    b = b.at[0, 0 * H:0 * H + n_hidden].set(b1.astype(jnp.float32))
    b = b.at[0, 1 * H:1 * H + n_hidden].set(b2.astype(jnp.float32))
    b = b.at[0, 2 * H:2 * H + n_hidden].set(b3.astype(jnp.float32))
    b = b.at[0, 3 * H:3 * H + n_sensitive].set(b4.astype(jnp.float32))
    return w, b


def adversary_forward(Z, w_packed, b_packed, n_sensitive):
    """Z: (N, in_dim).  Returns (N, n_sensitive) f32."""
    N, in_dim = Z.shape
    H = LANES
    Zc = Z.astype(w_packed.dtype)          # bf16 read halves Z's HBM traffic

    # Advisory cost estimate (padded-math flops; narrowed-output bytes).
    flops = 2 * N * (in_dim * H + 3 * H * H)
    bytes_accessed = (Zc.size * Zc.dtype.itemsize
                      + w_packed.size * w_packed.dtype.itemsize
                      + b_packed.size * b_packed.dtype.itemsize
                      + N * n_sensitive * 4)
    ce = pl.CostEstimate(flops=flops, transcendentals=0,
                         bytes_accessed=bytes_accessed)

    if N >= ROW_TILE:
        # Row-tiled, pipelined, megacore-parallel path; ragged last block is masked.
        tile = ROW_TILE
        grid = (pl.cdiv(N, tile),)
        z_spec = pl.BlockSpec((tile, in_dim), lambda i: (i, 0))
        w_spec = pl.BlockSpec((H, 4 * H), lambda i: (0, 0))      # resident weights
        b_spec = pl.BlockSpec((1, 4 * H), lambda i: (0, 0))      # resident biases
        o_spec = pl.BlockSpec((tile, n_sensitive), lambda i: (i, 0))
        cparams = pltpu.CompilerParams(dimension_semantics=("parallel",))
    else:
        # Small batch: single step, full-array blocks (launch-overhead-bound anyway).
        grid = ()
        z_spec = pl.BlockSpec((N, in_dim), lambda: (0, 0))
        w_spec = pl.BlockSpec((H, 4 * H), lambda: (0, 0))
        b_spec = pl.BlockSpec((1, 4 * H), lambda: (0, 0))
        o_spec = pl.BlockSpec((N, n_sensitive), lambda: (0, 0))
        cparams = pltpu.CompilerParams()

    return pl.pallas_call(
        adversary_kernel,
        out_shape=jax.ShapeDtypeStruct((N, n_sensitive), jnp.float32),
        grid=grid,
        in_specs=[z_spec, w_spec, b_spec],
        out_specs=o_spec,
        compiler_params=cparams,
        cost_estimate=ce,
    )(Zc, w_packed, b_packed)


def init_linear(key, fan_in, fan_out):
    """Deterministic init mimicking torch.nn.Linear: U(-1/sqrt(fan_in), +1/sqrt(fan_in))."""
    kw, kb = jax.random.split(key)
    bound = 1.0 / jnp.sqrt(jnp.float32(fan_in))
    # Stored as (fan_in, fan_out) so x @ W matches PyTorch's x @ W_torch.T
    w = jax.random.uniform(kw, (fan_in, fan_out), jnp.float32, -bound, bound)
    b = jax.random.uniform(kb, (fan_out,), jnp.float32, -bound, bound)
    return w, b


def reference_forward(Z, params):
    (w1, b1), (w2, b2), (w3, b3), (w4, b4) = params
    h = jax.nn.relu(Z @ w1 + b1)
    h = jax.nn.relu(h @ w2 + b2)
    h = jax.nn.relu(h @ w3 + b3)
    return h @ w4 + b4


if __name__ == "__main__":
    # Shapes consistent with the module:
    #   args.hidden2_dim1 (input feature dim of Z) = 16
    #   n_hidden = 32, n_sensitive = 4, batch = 8
    in_dim = 16
    n_hidden = 32
    n_sensitive = 4
    batch = 8

    key = jax.random.PRNGKey(0)
    kz, k1, k2, k3, k4, kz_big = jax.random.split(key, 6)

    Z = jax.random.normal(kz, (batch, in_dim), jnp.float32)
    params = (
        init_linear(k1, in_dim, n_hidden),
        init_linear(k2, n_hidden, n_hidden),
        init_linear(k3, n_hidden, n_hidden),
        init_linear(k4, n_hidden, n_sensitive),
    )

    w_packed, b_packed = pack_adversary_params(params, in_dim, n_hidden, n_sensitive)
    w_packed = jax.block_until_ready(w_packed)
    b_packed = jax.block_until_ready(b_packed)

    # Small batch: single full-block step. bf16 inputs -> relaxed tolerance vs f32 ref.
    out = adversary_forward(Z, w_packed, b_packed, n_sensitive)
    out = jax.block_until_ready(out)
    ref = reference_forward(Z, params)
    assert out.shape == (batch, n_sensitive)
    assert jnp.allclose(out, ref, atol=5e-2, rtol=5e-2)

    # Large, non-tile-multiple batch: exercises the cdiv grid + ragged last block.
    N_big = 5000
    Z_big = jax.random.normal(kz_big, (N_big, in_dim), jnp.float32)
    out_big = adversary_forward(Z_big, w_packed, b_packed, n_sensitive)
    out_big = jax.block_until_ready(out_big)
    ref_big = reference_forward(Z_big, params)
    assert out_big.shape == (N_big, n_sensitive)
    assert jnp.allclose(out_big, ref_big, atol=5e-2, rtol=5e-2)

    print("KERNEL_OK")
</pallas_src>

<mosaic_0001>
module attributes {stable_mosaic.version = 11 : i64} {
  func.func @adversary_kernel(%arg0: memref<8x16xbf16, #tpu.memory_space<vmem>>, %arg1: memref<128x512xbf16, #tpu.memory_space<vmem>>, %arg2: memref<1x512xf32, #tpu.memory_space<vmem>>, %arg3: memref<8x4xf32, #tpu.memory_space<vmem>>) attributes {dimension_semantics = [], scalar_prefetch = 0 : i64, scratch_operands = 0 : i64, tpu.core_type = #tpu.core_type<tc>} {
    %c0 = arith.constant 0 : index
    %c0_0 = arith.constant 0 : index
    %0 = vector.load %arg0[%c0, %c0_0] : memref<8x16xbf16, #tpu.memory_space<vmem>>, vector<8x16xbf16>
    %c0_1 = arith.constant 0 : index
    %c0_2 = arith.constant 0 : index
    %1 = vector.load %arg1[%c0_1, %c0_2] : memref<128x512xbf16, #tpu.memory_space<vmem>>, vector<16x128xbf16>
    %cst = arith.constant dense<0.000000e+00> : vector<8x128xf32>
    %2 = tpu.matmul %0, %1, %cst {dimension_numbers = #tpu.dot_dimension_numbers<[1], [0], [0], [1], [0, 0, 1, 1], [], []>} : vector<8x16xbf16>, vector<16x128xbf16>, vector<8x128xf32> -> vector<8x128xf32>
    %c0_3 = arith.constant 0 : index
    %c0_4 = arith.constant 0 : index
    %3 = vector.load %arg2[%c0_3, %c0_4] : memref<1x512xf32, #tpu.memory_space<vmem>>, vector<1x128xf32>
    %4 = vector.broadcast %3 : vector<1x128xf32> to vector<8x128xf32>
    %5 = arith.addf %2, %4 : vector<8x128xf32>
    %cst_5 = arith.constant 0.000000e+00 : f32
    %6 = vector.broadcast %cst_5 : f32 to vector<8x128xf32>
    %7 = arith.maximumf %5, %6 : vector<8x128xf32>
    %8 = arith.truncf %7 : vector<8x128xf32> to vector<8x128xbf16>
    %c0_6 = arith.constant 0 : index
    %c128 = arith.constant 128 : index
    %9 = vector.load %arg1[%c0_6, %c128] : memref<128x512xbf16, #tpu.memory_space<vmem>>, vector<128x128xbf16>
    %cst_7 = arith.constant dense<0.000000e+00> : vector<8x128xf32>
    %10 = tpu.matmul %8, %9, %cst_7 {dimension_numbers = #tpu.dot_dimension_numbers<[1], [0], [0], [1], [0, 0, 1, 1], [], []>} : vector<8x128xbf16>, vector<128x128xbf16>, vector<8x128xf32> -> vector<8x128xf32>
    %c0_8 = arith.constant 0 : index
    %c128_9 = arith.constant 128 : index
    %11 = vector.load %arg2[%c0_8, %c128_9] : memref<1x512xf32, #tpu.memory_space<vmem>>, vector<1x128xf32>
    %12 = vector.broadcast %11 : vector<1x128xf32> to vector<8x128xf32>
    %13 = arith.addf %10, %12 : vector<8x128xf32>
    %cst_10 = arith.constant 0.000000e+00 : f32
    %14 = vector.broadcast %cst_10 : f32 to vector<8x128xf32>
    %15 = arith.maximumf %13, %14 : vector<8x128xf32>
    %16 = arith.truncf %15 : vector<8x128xf32> to vector<8x128xbf16>
    %c0_11 = arith.constant 0 : index
    %c256 = arith.constant 256 : index
    %17 = vector.load %arg1[%c0_11, %c256] : memref<128x512xbf16, #tpu.memory_space<vmem>>, vector<128x128xbf16>
    %cst_12 = arith.constant dense<0.000000e+00> : vector<8x128xf32>
    %18 = tpu.matmul %16, %17, %cst_12 {dimension_numbers = #tpu.dot_dimension_numbers<[1], [0], [0], [1], [0, 0, 1, 1], [], []>} : vector<8x128xbf16>, vector<128x128xbf16>, vector<8x128xf32> -> vector<8x128xf32>
    %c0_13 = arith.constant 0 : index
    %c256_14 = arith.constant 256 : index
    %19 = vector.load %arg2[%c0_13, %c256_14] : memref<1x512xf32, #tpu.memory_space<vmem>>, vector<1x128xf32>
    %20 = vector.broadcast %19 : vector<1x128xf32> to vector<8x128xf32>
    %21 = arith.addf %18, %20 : vector<8x128xf32>
    %cst_15 = arith.constant 0.000000e+00 : f32
    %22 = vector.broadcast %cst_15 : f32 to vector<8x128xf32>
    %23 = arith.maximumf %21, %22 : vector<8x128xf32>
    %24 = arith.truncf %23 : vector<8x128xf32> to vector<8x128xbf16>
    %c0_16 = arith.constant 0 : index
    %c384 = arith.constant 384 : index
    %25 = vector.load %arg1[%c0_16, %c384] : memref<128x512xbf16, #tpu.memory_space<vmem>>, vector<128x128xbf16>
    %cst_17 = arith.constant dense<0.000000e+00> : vector<8x128xf32>
    %26 = tpu.matmul %24, %25, %cst_17 {dimension_numbers = #tpu.dot_dimension_numbers<[1], [0], [0], [1], [0, 0, 1, 1], [], []>} : vector<8x128xbf16>, vector<128x128xbf16>, vector<8x128xf32> -> vector<8x128xf32>
    %c0_18 = arith.constant 0 : index
    %c384_19 = arith.constant 384 : index
    %27 = vector.load %arg2[%c0_18, %c384_19] : memref<1x512xf32, #tpu.memory_space<vmem>>, vector<1x128xf32>
    %28 = vector.broadcast %27 : vector<1x128xf32> to vector<8x128xf32>
    %29 = arith.addf %26, %28 : vector<8x128xf32>
    %30 = vector.extract_strided_slice %29 {offsets = [0, 0], sizes = [8, 4], strides = [1, 1]} : vector<8x128xf32> to vector<8x4xf32>
    %c0_20 = arith.constant 0 : index
    %c0_21 = arith.constant 0 : index
    %31 = vector.load %arg3[%c0_20, %c0_21] : memref<8x4xf32, #tpu.memory_space<vmem>>, vector<8x4xf32>
    tpu.vector_store %arg3[%c0_20, %c0_21], %30 {strides = array<i32>} : memref<8x4xf32, #tpu.memory_space<vmem>>, vector<8x4xf32>,
    return
  }
}

</mosaic_0001>

<llo_original>
// kernel: tpu_custom_call.1
$region0: #{tpu_custom_call.1}
  #allocation0 [shape = 'u32[]', space=smem, size = 0x4, offset = 0x4, fixed_abs, tag = 'smem constant byte address 0x4 - core index']
  #allocation1 [shape = 'u32[144,128]{1,0:T(1,128)}', space=vmem, size = 0x12000, scoped, tag = 'internal scratch']
  %s0 = inlined_call_operand.hbm [shape: bf16[8,16], index: 0, kind: input, shape index: {}]
  %s1 = inlined_call_operand.hbm [shape: bf16[128,512], index: 1, kind: input, shape index: {}]
  %s2 = inlined_call_operand.vmem [shape: f32[1,512], index: 2, kind: input, shape index: {}]
  %s3 = inlined_call_operand.vmem [shape: f32[8,4], index: 3, kind: output, shape index: {}]
  %s4 = sld [smem:[#allocation0]]
  $region30: #{tpu_custom_call.1} parent=0
    _
  %s6 = ssub.s32 1, %s4
  %s7 = scalar_select 0, %s6, %s4
  $region1: #{tpu_custom_call.1} parent=0
    #allocation2 [shape = 'u8[2048]{0}', space=vmem, size = 0x800, scoped, tag = 'input window, operand 0, single buffered']
    #allocation3 [shape = 's32[1]{0}', space=sflag, size = 0x4, scoped, tag = 'scoped memory for tpu_custom_call.1']
    #allocation4 [shape = 'u8[131072]{0}', space=vmem, size = 0x20000, scoped, tag = 'input window, operand 1, single buffered']
    #allocation5 [shape = 's32[1]{0}', space=sflag, size = 0x4, scoped, tag = 'scoped memory for tpu_custom_call.1']
    %8 = vsyncpa [#allocation3], 0
    %9 = vsyncpa [#allocation5], 0
    // Predicated region
    $region2: #{tpu_custom_call.1} parent=1 // pred_check
      _
    $region3: #{tpu_custom_call.1} parent=1 // pred_check_branch
      %11 = sbr.rel (0) target = $region5
    $region4: #{tpu_custom_call.1} parent=1 // pred_region
      %s13 = ssub.s32 64, 64
      %14 = vsyncadd [#allocation3], %s13
      %s16 = sshll.u32 [#allocation2], 4
      %s17 = int_to_ptr.vmem [resolvable:$true] %s16
      %19 = dma.hbm_to_vmem [thread:$0]  %s0, 64, %s17, [#allocation3]
    $region5: #{tpu_custom_call.1} parent=1 // pred_fallthru
      _
    // Predicated region
    $region6: #{tpu_custom_call.1} parent=1 // pred_check
      _
    $region7: #{tpu_custom_call.1} parent=1 // pred_check_branch
      %21 = sbr.rel (0) target = $region9
    $region8: #{tpu_custom_call.1} parent=1 // pred_region
      %s23 = ssub.s32 4096, 4096
      %24 = vsyncadd [#allocation5], %s23
      %s25 = sshll.u32 [#allocation4], 4
      %s26 = int_to_ptr.vmem [resolvable:$true] %s25
      %31 = dma.hbm_to_vmem [thread:$0]  %s1, 4096, %s26, [#allocation5], 256, 256, 16
    $region9: #{tpu_custom_call.1} parent=1 // pred_fallthru
      _
    // Predicated region
    $region10: #{tpu_custom_call.1} parent=1 // pred_check
      _
    $region11: #{tpu_custom_call.1} parent=1 // pred_check_branch
      %33 = sbr.rel (0) target = $region13
    $region12: #{tpu_custom_call.1} parent=1 // pred_region
      _
    $region13: #{tpu_custom_call.1} parent=1 // pred_fallthru
      _
    // Predicated region
    $region14: #{tpu_custom_call.1} parent=1 // pred_check
      _
    $region15: #{tpu_custom_call.1} parent=1 // pred_check_branch
      %35 = sbr.rel (0) target = $region17
    $region16: #{tpu_custom_call.1} parent=1 // pred_region
      %36 = dma.done [#allocation3], 64
    $region17: #{tpu_custom_call.1} parent=1 // pred_fallthru
      _
    // Predicated region
    $region18: #{tpu_custom_call.1} parent=1 // pred_check
      _
    $region19: #{tpu_custom_call.1} parent=1 // pred_check_branch
      %38 = sbr.rel (0) target = $region21
    $region20: #{tpu_custom_call.1} parent=1 // pred_region
      %39 = dma.done [#allocation5], 4096
    $region21: #{tpu_custom_call.1} parent=1 // pred_fallthru
      _
    %v41 = vld [vmem:[#allocation2] sm:$0xf]
    %v42 = vld [vmem:[#allocation4] sm:$0xf]
    %v43 = vld [vmem:[#allocation4 + $0x10] sm:$0xf]
    %v44 = vld [vmem:[%s2] sm:$0x1]
    %v46 = vlaneseq
    %v47 = vshrl.u32 %v46, 7
    %v48 = vsub.s32 0, %v47
    %v49 = vrot.slane %v44, %v48
    %v53 = vunpack.c.l.b16 %v42
    %v54 = vunpack.c.l.b16 %v43
    %v55 = vpack.c.b16 %v54, %v53
    %vm57 = vcmask 130048
    %v59 = vsel %vm57, %v41, 0
    %61 = vmatprep.subr.bf16.mxu0 0
    %62 = vmatpush1.bf16.msra.mxu0 %v55
    %63 = vmatprep.subr.bf16.mxu0 0
    %64 = vmatpush1.bf16.msra.mxu0 0
    %65 = vmatprep.subr.bf16.mxu0 0
    %66 = vmatpush1.bf16.msra.mxu0 0
    %67 = vmatprep.subr.bf16.mxu0 0
    %68 = vmatpush1.bf16.msra.mxu0 0
    %69 = vmatprep.subr.bf16.mxu0 0
    %70 = vmatpush1.bf16.msra.mxu0 0
    %71 = vmatprep.subr.bf16.mxu0 0
    %72 = vmatpush1.bf16.msra.mxu0 0
    %73 = vmatprep.subr.bf16.mxu0 0
    %74 = vmatpush1.bf16.msra.mxu0 0
    %75 = vmatprep.subr.bf16.mxu0 0
    %76 = vmatpush1.bf16.msra.mxu0 0
    %77 = vmatprep.subr.bf16.mxu0 0
    %78 = vmatpush1.bf16.msra.mxu0 0
    %79 = vmatprep.subr.bf16.mxu0 0
    %80 = vmatpush1.bf16.msra.mxu0 0
    %81 = vmatprep.subr.bf16.mxu0 0
    %82 = vmatpush1.bf16.msra.mxu0 0
    %83 = vmatprep.subr.bf16.mxu0 0
    %84 = vmatpush1.bf16.msra.mxu0 0
    %85 = vmatprep.subr.bf16.mxu0 0
    %86 = vmatpush1.bf16.msra.mxu0 0
    %87 = vmatprep.subr.bf16.mxu0 0
    %88 = vmatpush1.bf16.msra.mxu0 0
    %89 = vmatprep.subr.bf16.mxu0 0
    %90 = vmatpush1.bf16.msra.mxu0 0
    %91 = vmatprep.subr.bf16.mxu0 0
    %92 = vmatpush1.bf16.msra.mxu0 0
    %93 = vmatprep.mubr.bf16.mxu0 0
    %94 = vmatmul.mubr.bf16.gmra.mrb[0].mxu0 %v59
    %v95 = vpop.f32.mrb[0].mxu0
    %v96 = vadd.f32 %v49, %v95
    %v97 = vpop.f32.mrb[0].mxu0
    %v98 = vpop.f32.mrb[0].mxu0
    %v99 = vpop.f32.mrb[0].mxu0
    %100 = vdwg.mxu0
    %v101 = vmax.f32 %v96, 0.0
    %v102 = vpack.c.bf16 %v101, %v101
    %v103 = vld [vmem:[#allocation4 + $0x4] sm:$0xf]
    %v104 = vld [vmem:[#allocation4 + $0x14] sm:$0xf]
    %v105 = vld [vmem:[#allocation4 + $0x24] sm:$0xf]
    %v106 = vld [vmem:[#allocation4 + $0x34] sm:$0xf]
    %v107 = vld [vmem:[#allocation4 + $0x44] sm:$0xf]
    %v108 = vld [vmem:[#allocation4 + $0x54] sm:$0xf]
    %v109 = vld [vmem:[#allocation4 + $0x64] sm:$0xf]
    %v110 = vld [vmem:[#allocation4 + $0x74] sm:$0xf]
    %v111 = vld [vmem:[#allocation4 + $0x84] sm:$0xf]
    %v112 = vld [vmem:[#allocation4 + $0x94] sm:$0xf]
    %v113 = vld [vmem:[#allocation4 + $0xa4] sm:$0xf]
    %v114 = vld [vmem:[#allocation4 + $0xb4] sm:$0xf]
    %v115 = vld [vmem:[#allocation4 + $0xc4] sm:$0xf]
    %v116 = vld [vmem:[#allocation4 + $0xd4] sm:$0xf]
    %v117 = vld [vmem:[#allocation4 + $0xe4] sm:$0xf]
    %v118 = vld [vmem:[#allocation4 + $0xf4] sm:$0xf]
    %v119 = vld [vmem:[%s2 + $0x1] sm:$0x1]
    %v121 = vlaneseq
    %v122 = vshrl.u32 %v121, 7
    %v123 = vsub.s32 0, %v122
    %v124 = vrot.slane %v119, %v123
    %v142 = vunpack.c.l.b16 %v103
    %v143 = vunpack.c.l.b16 %v104
    %v144 = vunpack.c.l.b16 %v105
    %v145 = vunpack.c.l.b16 %v106
    %v146 = vunpack.c.l.b16 %v107
    %v147 = vunpack.c.l.b16 %v108
    %v148 = vunpack.c.l.b16 %v109
    %v149 = vunpack.c.l.b16 %v110
    %v150 = vunpack.c.l.b16 %v111
    %v151 = vunpack.c.l.b16 %v112
    %v152 = vunpack.c.l.b16 %v113
    %v153 = vunpack.c.l.b16 %v114
    %v154 = vunpack.c.l.b16 %v115
    %v155 = vunpack.c.l.b16 %v116
    %v156 = vunpack.c.l.b16 %v117
    %v157 = vunpack.c.l.b16 %v118
    %v158 = vpack.c.b16 %v143, %v142
    %v159 = vpack.c.b16 %v145, %v144
    %v160 = vpack.c.b16 %v147, %v146
    %v161 = vpack.c.b16 %v149, %v148
    %v162 = vpack.c.b16 %v151, %v150
    %v163 = vpack.c.b16 %v153, %v152
    %v164 = vpack.c.b16 %v155, %v154
    %v165 = vpack.c.b16 %v157, %v156
    %174 = vmatprep.subr.bf16.mxu0 0
    %175 = vmatpush1.bf16.msra.mxu0 %v158
    %176 = vmatprep.subr.bf16.mxu0 0
    %177 = vmatpush1.bf16.msra.mxu0 %v159
    %178 = vmatprep.subr.bf16.mxu0 0
    %179 = vmatpush1.bf16.msra.mxu0 %v160
    %180 = vmatprep.subr.bf16.mxu0 0
    %181 = vmatpush1.bf16.msra.mxu0 %v161
    %182 = vmatprep.subr.bf16.mxu0 0
    %183 = vmatpush1.bf16.msra.mxu0 %v162
    %184 = vmatprep.subr.bf16.mxu0 0
    %185 = vmatpush1.bf16.msra.mxu0 %v163
    %186 = vmatprep.subr.bf16.mxu0 0
    %187 = vmatpush1.bf16.msra.mxu0 %v164
    %188 = vmatprep.subr.bf16.mxu0 0
    %189 = vmatpush1.bf16.msra.mxu0 %v165
    %190 = vmatprep.subr.bf16.mxu0 0
    %191 = vmatpush1.bf16.msra.mxu0 0
    %192 = vmatprep.subr.bf16.mxu0 0
    %193 = vmatpush1.bf16.msra.mxu0 0
    %194 = vmatprep.subr.bf16.mxu0 0
    %195 = vmatpush1.bf16.msra.mxu0 0
    %196 = vmatprep.subr.bf16.mxu0 0
    %197 = vmatpush1.bf16.msra.mxu0 0
    %198 = vmatprep.subr.bf16.mxu0 0
    %199 = vmatpush1.bf16.msra.mxu0 0
    %200 = vmatprep.subr.bf16.mxu0 0
    %201 = vmatpush1.bf16.msra.mxu0 0
    %202 = vmatprep.subr.bf16.mxu0 0
    %203 = vmatpush1.bf16.msra.mxu0 0
    %204 = vmatprep.subr.bf16.mxu0 0
    %205 = vmatpush1.bf16.msra.mxu0 0
    %206 = vmatprep.mubr.bf16.mxu0 0
    %207 = vmatmul.mubr.bf16.gmra.mrb[0].mxu0 %v102
    %v208 = vpop.f32.mrb[0].mxu0
    %v209 = vadd.f32 %v124, %v208
    %v210 = vpop.f32.mrb[0].mxu0
    %v211 = vpop.f32.mrb[0].mxu0
    %v212 = vpop.f32.mrb[0].mxu0
    %213 = vdwg.mxu0
    %v214 = vmax.f32 %v209, 0.0
    %v215 = vpack.c.bf16 %v214, %v214
    %v216 = vld [vmem:[#allocation4 + $0x8] sm:$0xf]
    %v217 = vld [vmem:[#allocation4 + $0x18] sm:$0xf]
    %v218 = vld [vmem:[#allocation4 + $0x28] sm:$0xf]
    %v219 = vld [vmem:[#allocation4 + $0x38] sm:$0xf]
    %v220 = vld [vmem:[#allocation4 + $0x48] sm:$0xf]
    %v221 = vld [vmem:[#allocation4 + $0x58] sm:$0xf]
    %v222 = vld [vmem:[#allocation4 + $0x68] sm:$0xf]
    %v223 = vld [vmem:[#allocation4 + $0x78] sm:$0xf]
    %v224 = vld [vmem:[#allocation4 + $0x88] sm:$0xf]
    %v225 = vld [vmem:[#allocation4 + $0x98] sm:$0xf]
    %v226 = vld [vmem:[#allocation4 + $0xa8] sm:$0xf]
    %v227 = vld [vmem:[#allocation4 + $0xb8] sm:$0xf]
    %v228 = vld [vmem:[#allocation4 + $0xc8] sm:$0xf]
    %v229 = vld [vmem:[#allocation4 + $0xd8] sm:$0xf]
    %v230 = vld [vmem:[#allocation4 + $0xe8] sm:$0xf]
    %v231 = vld [vmem:[#allocation4 + $0xf8] sm:$0xf]
    %v232 = vld [vmem:[%s2 + $0x2] sm:$0x1]
    %v234 = vlaneseq
    %v235 = vshrl.u32 %v234, 7
    %v236 = vsub.s32 0, %v235
    %v237 = vrot.slane %v232, %v236
    %v255 = vunpack.c.l.b16 %v216
    %v256 = vunpack.c.l.b16 %v217
    %v257 = vunpack.c.l.b16 %v218
    %v258 = vunpack.c.l.b16 %v219
    %v259 = vunpack.c.l.b16 %v220
    %v260 = vunpack.c.l.b16 %v221
    %v261 = vunpack.c.l.b16 %v222
    %v262 = vunpack.c.l.b16 %v223
    %v263 = vunpack.c.l.b16 %v224
    %v264 = vunpack.c.l.b16 %v225
    %v265 = vunpack.c.l.b16 %v226
    %v266 = vunpack.c.l.b16 %v227
    %v267 = vunpack.c.l.b16 %v228
    %v268 = vunpack.c.l.b16 %v229
    %v269 = vunpack.c.l.b16 %v230
    %v270 = vunpack.c.l.b16 %v231
    %v271 = vpack.c.b16 %v256, %v255
    %v272 = vpack.c.b16 %v258, %v257
    %v273 = vpack.c.b16 %v260, %v259
    %v274 = vpack.c.b16 %v262, %v261
    %v275 = vpack.c.b16 %v264, %v263
    %v276 = vpack.c.b16 %v266, %v265
    %v277 = vpack.c.b16 %v268, %v267
    %v278 = vpack.c.b16 %v270, %v269
    %287 = vmatprep.subr.bf16.mxu0 0
    %288 = vmatpush1.bf16.msra.mxu0 %v271
    %289 = vmatprep.subr.bf16.mxu0 0
    %290 = vmatpush1.bf16.msra.mxu0 %v272
    %291 = vmatprep.subr.bf16.mxu0 0
    %292 = vmatpush1.bf16.msra.mxu0 %v273
    %293 = vmatprep.subr.bf16.mxu0 0
    %294 = vmatpush1.bf16.msra.mxu0 %v274
    %295 = vmatprep.subr.bf16.mxu0 0
    %296 = vmatpush1.bf16.msra.mxu0 %v275
    %297 = vmatprep.subr.bf16.mxu0 0
    %298 = vmatpush1.bf16.msra.mxu0 %v276
    %299 = vmatprep.subr.bf16.mxu0 0
    %300 = vmatpush1.bf16.msra.mxu0 %v277
    %301 = vmatprep.subr.bf16.mxu0 0
    %302 = vmatpush1.bf16.msra.mxu0 %v278
    %303 = vmatprep.subr.bf16.mxu0 0
    %304 = vmatpush1.bf16.msra.mxu0 0
    %305 = vmatprep.subr.bf16.mxu0 0
    %306 = vmatpush1.bf16.msra.mxu0 0
    %307 = vmatprep.subr.bf16.mxu0 0
    %308 = vmatpush1.bf16.msra.mxu0 0
    %309 = vmatprep.subr.bf16.mxu0 0
    %310 = vmatpush1.bf16.msra.mxu0 0
    %311 = vmatprep.subr.bf16.mxu0 0
    %312 = vmatpush1.bf16.msra.mxu0 0
    %313 = vmatprep.subr.bf16.mxu0 0
    %314 = vmatpush1.bf16.msra.mxu0 0
    %315 = vmatprep.subr.bf16.mxu0 0
    %316 = vmatpush1.bf16.msra.mxu0 0
    %317 = vmatprep.subr.bf16.mxu0 0
    %318 = vmatpush1.bf16.msra.mxu0 0
    %319 = vmatprep.mubr.bf16.mxu0 0
    %320 = vmatmul.mubr.bf16.gmra.mrb[0].mxu0 %v215
    %v321 = vpop.f32.mrb[0].mxu0
    %v322 = vadd.f32 %v237, %v321
    %v323 = vpop.f32.mrb[0].mxu0
    %v324 = vpop.f32.mrb[0].mxu0
    %v325 = vpop.f32.mrb[0].mxu0
    %326 = vdwg.mxu0
    %v327 = vmax.f32 %v322, 0.0
    %v328 = vpack.c.bf16 %v327, %v327
    %v329 = vld [vmem:[#allocation4 + $0xc] sm:$0xf]
    %v330 = vld [vmem:[#allocation4 + $0x1c] sm:$0xf]
    %v331 = vld [vmem:[#allocation4 + $0x2c] sm:$0xf]
    %v332 = vld [vmem:[#allocation4 + $0x3c] sm:$0xf]
    %v333 = vld [vmem:[#allocation4 + $0x4c] sm:$0xf]
    %v334 = vld [vmem:[#allocation4 + $0x5c] sm:$0xf]
    %v335 = vld [vmem:[#allocation4 + $0x6c] sm:$0xf]
    %v336 = vld [vmem:[#allocation4 + $0x7c] sm:$0xf]
    %v337 = vld [vmem:[#allocation4 + $0x8c] sm:$0xf]
    %v338 = vld [vmem:[#allocation4 + $0x9c] sm:$0xf]
    %v339 = vld [vmem:[#allocation4 + $0xac] sm:$0xf]
    %v340 = vld [vmem:[#allocation4 + $0xbc] sm:$0xf]
    %v341 = vld [vmem:[#allocation4 + $0xcc] sm:$0xf]
    %v342 = vld [vmem:[#allocation4 + $0xdc] sm:$0xf]
    %v343 = vld [vmem:[#allocation4 + $0xec] sm:$0xf]
    %v344 = vld [vmem:[#allocation4 + $0xfc] sm:$0xf]
    %v345 = vld [vmem:[%s2 + $0x3] sm:$0x1]
    %v347 = vlaneseq
    %v348 = vshrl.u32 %v347, 7
    %v349 = vsub.s32 0, %v348
    %v350 = vrot.slane %v345, %v349
    %v368 = vunpack.c.l.b16 %v329
    %v369 = vunpack.c.l.b16 %v330
    %v370 = vunpack.c.l.b16 %v331
    %v371 = vunpack.c.l.b16 %v332
    %v372 = vunpack.c.l.b16 %v333
    %v373 = vunpack.c.l.b16 %v334
    %v374 = vunpack.c.l.b16 %v335
    %v375 = vunpack.c.l.b16 %v336
    %v376 = vunpack.c.l.b16 %v337
    %v377 = vunpack.c.l.b16 %v338
    %v378 = vunpack.c.l.b16 %v339
    %v379 = vunpack.c.l.b16 %v340
    %v380 = vunpack.c.l.b16 %v341
    %v381 = vunpack.c.l.b16 %v342
    %v382 = vunpack.c.l.b16 %v343
    %v383 = vunpack.c.l.b16 %v344
    %v384 = vpack.c.b16 %v369, %v368
    %v385 = vpack.c.b16 %v371, %v370
    %v386 = vpack.c.b16 %v373, %v372
    %v387 = vpack.c.b16 %v375, %v374
    %v388 = vpack.c.b16 %v377, %v376
    %v389 = vpack.c.b16 %v379, %v378
    %v390 = vpack.c.b16 %v381, %v380
    %v391 = vpack.c.b16 %v383, %v382
    %400 = vmatprep.subr.bf16.mxu0 0
    %401 = vmatpush1.bf16.msra.mxu0 %v384
    %402 = vmatprep.subr.bf16.mxu0 0
    %403 = vmatpush1.bf16.msra.mxu0 %v385
    %404 = vmatprep.subr.bf16.mxu0 0
    %405 = vmatpush1.bf16.msra.mxu0 %v386
    %406 = vmatprep.subr.bf16.mxu0 0
    %407 = vmatpush1.bf16.msra.mxu0 %v387
    %408 = vmatprep.subr.bf16.mxu0 0
    %409 = vmatpush1.bf16.msra.mxu0 %v388
    %410 = vmatprep.subr.bf16.mxu0 0
    %411 = vmatpush1.bf16.msra.mxu0 %v389
    %412 = vmatprep.subr.bf16.mxu0 0
    %413 = vmatpush1.bf16.msra.mxu0 %v390
    %414 = vmatprep.subr.bf16.mxu0 0
    %415 = vmatpush1.bf16.msra.mxu0 %v391
    %416 = vmatprep.subr.bf16.mxu0 0
    %417 = vmatpush1.bf16.msra.mxu0 0
    %418 = vmatprep.subr.bf16.mxu0 0
    %419 = vmatpush1.bf16.msra.mxu0 0
    %420 = vmatprep.subr.bf16.mxu0 0
    %421 = vmatpush1.bf16.msra.mxu0 0
    %422 = vmatprep.subr.bf16.mxu0 0
    %423 = vmatpush1.bf16.msra.mxu0 0
    %424 = vmatprep.subr.bf16.mxu0 0
    %425 = vmatpush1.bf16.msra.mxu0 0
    %426 = vmatprep.subr.bf16.mxu0 0
    %427 = vmatpush1.bf16.msra.mxu0 0
    %428 = vmatprep.subr.bf16.mxu0 0
    %429 = vmatpush1.bf16.msra.mxu0 0
    %430 = vmatprep.subr.bf16.mxu0 0
    %431 = vmatpush1.bf16.msra.mxu0 0
    %432 = vmatprep.mubr.bf16.mxu0 0
    %433 = vmatmul.mubr.bf16.gmra.mrb[0].mxu0 %v328
    %v434 = vpop.f32.mrb[0].mxu0
    %v435 = vadd.f32 %v350, %v434
    %v436 = vpop.f32.mrb[0].mxu0
    %v437 = vpop.f32.mrb[0].mxu0
    %v438 = vpop.f32.mrb[0].mxu0
    %439 = vdwg.mxu0
    %vm440 = vcmask 31744
    %441 = vst.msk [vmem:[%s3] sm:$0xff] %vm440, %v435
    // Predicated region
    $region22: #{tpu_custom_call.1} parent=1 // pred_check
      _
    $region23: #{tpu_custom_call.1} parent=1 // pred_check_branch
      %443 = sbr.rel (0) target = $region25
    $region24: #{tpu_custom_call.1} parent=1 // pred_region
      _
    $region25: #{tpu_custom_call.1} parent=1 // pred_fallthru
      _
    // Predicated region
    $region26: #{tpu_custom_call.1} parent=1 // pred_check
      _
    $region27: #{tpu_custom_call.1} parent=1 // pred_check_branch
      %445 = sbr.rel (0) target = $region29
    $region28: #{tpu_custom_call.1} parent=1 // pred_region
      _
    $region29: #{tpu_custom_call.1} parent=1 // pred_fallthru
      _
    %446 = vsyncpa [#allocation3], 1
    %447 = vsyncpa [#allocation5], 1

</llo_original>
